<compile_context>
chip_gen: v7x
topology: tpu7x:2x2x1
jax: 0.10.0
libtpu: 0.0.40
codegen_flags: <defaults>
</compile_context>

<pallas_src>
import jax
import jax.numpy as jnp
from jax.experimental import pallas as pl
from jax.experimental.pallas import tpu as pltpu

INPUT_DIM = 12
HIDDEN_DIM = 64
OUTPUT_DIM = 1


def _round_up(n, m):
    return ((n + m - 1) // m) * m


def pinn_kernel(xT_ref, w1T_ref, b1_ref, w2_ref, b2_ref, oT_ref):
    # Hidden layer in transposed layout:
    #   hT = relu(W1^T-free form:  (HIDDEN, INPUT) @ (INPUT, TB) + b1(HIDDEN,1))
    h = jnp.dot(w1T_ref[...], xT_ref[...], preferred_element_type=jnp.float32)
    h = jnp.maximum(h + b1_ref[...], 0.0)                     # (HIDDEN, TB)
    # Output layer: OUTPUT_DIM == 1, so use a VPU multiply + sublane reduce
    # instead of an N=1 MXU matmul.
    out = jnp.sum(h * w2_ref[...], axis=0, keepdims=True)     # (1, TB)
    oT_ref[...] = (out + b2_ref[0]).astype(oT_ref.dtype)


def pinn_forward(x, w1, b1, w2, b2, *, block_b=1024):
    """x: (B, INPUT_DIM) f32.  Returns (B, OUTPUT_DIM) f32.

    w1: (INPUT_DIM, HIDDEN_DIM)   (transpose of PyTorch's weight)
    b1: (HIDDEN_DIM,)
    w2: (HIDDEN_DIM, OUTPUT_DIM)
    b2: (OUTPUT_DIM,)
    """
    B = x.shape[0]

    # Batch tile: multiple of 128 (lane width), capped by block_b.
    tb = max(128, min(_round_up(block_b, 128), _round_up(B, 128)))
    Bp = _round_up(B, tb)

    # Lane-dense, transposed operands.
    xT = x.T                                            # (INPUT_DIM, B)
    if Bp != B:
        xT = jnp.pad(xT, ((0, 0), (0, Bp - B)))         # pad batch (lanes)
    w1T = w1.T                                          # (HIDDEN, INPUT)
    b1c = b1.reshape(HIDDEN_DIM, 1)                     # broadcast over lanes
    w2c = w2.reshape(HIDDEN_DIM, OUTPUT_DIM)            # (HIDDEN, 1)
    b2s = b2.reshape(OUTPUT_DIM)                        # scalar in SMEM

    grid = (pl.cdiv(Bp, tb),)

    outT = pl.pallas_call(
        pinn_kernel,
        out_shape=jax.ShapeDtypeStruct((OUTPUT_DIM, Bp), jnp.float32),
        grid=grid,
        in_specs=[
            # x^T: batch-tiled along lanes.
            pl.BlockSpec((INPUT_DIM, tb), lambda i: (0, i)),
            # Weights / biases: same block every step -> stay resident in VMEM.
            pl.BlockSpec((HIDDEN_DIM, INPUT_DIM), lambda i: (0, 0)),
            pl.BlockSpec((HIDDEN_DIM, 1), lambda i: (0, 0)),
            pl.BlockSpec((HIDDEN_DIM, OUTPUT_DIM), lambda i: (0, 0)),
            # b2 scalar lives in SMEM (no padded VMEM tile for one float).
            pl.BlockSpec(memory_space=pltpu.MemorySpace.SMEM),
        ],
        out_specs=pl.BlockSpec((OUTPUT_DIM, tb), lambda i: (0, i)),
        compiler_params=pltpu.CompilerParams(
            dimension_semantics=("parallel",)),
    )(xT, w1T, b1c, w2c, b2s)

    # Back to the PyTorch-facing (B, OUTPUT_DIM) layout.
    return outT[:, :B].T


def init_params(key):
    """Deterministic init mimicking nn.Linear's default U(-1/sqrt(fan_in), +)."""
    k1, k2, k3, k4 = jax.random.split(key, 4)
    bound1 = 1.0 / jnp.sqrt(jnp.float32(INPUT_DIM))
    bound2 = 1.0 / jnp.sqrt(jnp.float32(HIDDEN_DIM))
    # Stored as (in_features, out_features) == transpose of PyTorch's weight.
    w1 = jax.random.uniform(k1, (INPUT_DIM, HIDDEN_DIM), jnp.float32,
                            -bound1, bound1)
    b1 = jax.random.uniform(k2, (HIDDEN_DIM,), jnp.float32, -bound1, bound1)
    w2 = jax.random.uniform(k3, (HIDDEN_DIM, OUTPUT_DIM), jnp.float32,
                            -bound2, bound2)
    b2 = jax.random.uniform(k4, (OUTPUT_DIM,), jnp.float32, -bound2, bound2)
    return w1, b1, w2, b2


if __name__ == "__main__":
    key = jax.random.PRNGKey(0)
    k_params, k_x = jax.random.split(key)

    w1, b1, w2, b2 = init_params(k_params)

    # Small-but-nontrivial batch; block_b=128 forces 2 grid steps and exercises
    # the ragged-batch padding path (200 -> 256).
    B = 200
    x = jax.random.normal(k_x, (B, INPUT_DIM), jnp.float32)

    out = pinn_forward(x, w1, b1, w2, b2, block_b=128)
    out = jax.block_until_ready(out)

    # Reference check in plain JAX (same math as the PyTorch module).
    ref = jnp.maximum(x @ w1 + b1, 0.0) @ w2 + b2
    assert out.shape == (B, OUTPUT_DIM)
    assert jnp.allclose(out, ref, atol=1e-5, rtol=1e-5)

    print("KERNEL_OK")
</pallas_src>

<mosaic_0001>
module attributes {stable_mosaic.version = 11 : i64} {
  func.func @pinn_kernel(%arg0: i32, %arg1: memref<12x128xf32, #tpu.memory_space<vmem>>, %arg2: memref<64x12xf32, #tpu.memory_space<vmem>>, %arg3: memref<64x1xf32, #tpu.memory_space<vmem>>, %arg4: memref<64x1xf32, #tpu.memory_space<vmem>>, %arg5: memref<1xf32, #tpu.memory_space<smem>>, %arg6: memref<1x128xf32, #tpu.memory_space<vmem>>) attributes {dimension_semantics = [#tpu.dimension_semantics<parallel>], iteration_bounds = array<i64: 2>, scalar_prefetch = 0 : i64, scratch_operands = 0 : i64, tpu.core_type = #tpu.core_type<tc>, window_params = [{transform_indices = @transform_0, window_bounds = array<i64: 12, 128>}, {pipeline_mode = #tpu.pipeline_mode<synchronous>, transform_indices = @transform_1, window_bounds = array<i64: 64, 12>}, {pipeline_mode = #tpu.pipeline_mode<synchronous>, transform_indices = @transform_2, window_bounds = array<i64: 64, 1>}, {pipeline_mode = #tpu.pipeline_mode<synchronous>, transform_indices = @transform_3, window_bounds = array<i64: 64, 1>}, {transform_indices = @transform_4, window_bounds = array<i64: 1>}, {transform_indices = @transform_5, window_bounds = array<i64: 1, 128>}]} {
    %c0 = arith.constant 0 : index
    %c0_0 = arith.constant 0 : index
    %0 = vector.load %arg2[%c0, %c0_0] : memref<64x12xf32, #tpu.memory_space<vmem>>, vector<64x12xf32>
    %c0_1 = arith.constant 0 : index
    %c0_2 = arith.constant 0 : index
    %1 = vector.load %arg1[%c0_1, %c0_2] : memref<12x128xf32, #tpu.memory_space<vmem>>, vector<12x128xf32>
    %cst = arith.constant dense<0.000000e+00> : vector<64x128xf32>
    %2 = tpu.matmul %0, %1, %cst {dimension_numbers = #tpu.dot_dimension_numbers<[1], [0], [0], [1], [0, 0, 1, 1], [], []>} : vector<64x12xf32>, vector<12x128xf32>, vector<64x128xf32> -> vector<64x128xf32>
    %c0_3 = arith.constant 0 : index
    %c0_4 = arith.constant 0 : index
    %3 = vector.load %arg3[%c0_3, %c0_4] : memref<64x1xf32, #tpu.memory_space<vmem>>, vector<64x1xf32>
    %4 = vector.broadcast %3 : vector<64x1xf32> to vector<64x128xf32>
    %5 = arith.addf %2, %4 : vector<64x128xf32>
    %cst_5 = arith.constant 0.000000e+00 : f32
    %6 = vector.broadcast %cst_5 : f32 to vector<64x128xf32>
    %7 = arith.maximumf %5, %6 : vector<64x128xf32>
    %c0_6 = arith.constant 0 : index
    %c0_7 = arith.constant 0 : index
    %8 = vector.load %arg4[%c0_6, %c0_7] : memref<64x1xf32, #tpu.memory_space<vmem>>, vector<64x1xf32>
    %9 = vector.broadcast %8 : vector<64x1xf32> to vector<64x128xf32>
    %10 = arith.mulf %7, %9 : vector<64x128xf32>
    %cst_8 = arith.constant dense<0.000000e+00> : vector<128xf32>
    %11 = vector.multi_reduction <add>, %10, %cst_8 [0] : vector<64x128xf32> to vector<128xf32>
    %12 = vector.shape_cast %11 : vector<128xf32> to vector<1x128xf32>
    %c0_9 = arith.constant 0 : index
    %13 = memref.load %arg5[%c0_9] : memref<1xf32, #tpu.memory_space<smem>>
    %14 = vector.broadcast %13 : f32 to vector<1x128xf32>
    %15 = arith.addf %12, %14 : vector<1x128xf32>
    %c0_10 = arith.constant 0 : index
    %c0_11 = arith.constant 0 : index
    %16 = vector.load %arg6[%c0_10, %c0_11] : memref<1x128xf32, #tpu.memory_space<vmem>>, vector<1x128xf32>
    tpu.vector_store %arg6[%c0_10, %c0_11], %15 {strides = array<i32>} : memref<1x128xf32, #tpu.memory_space<vmem>>, vector<1x128xf32>,
    return
  }
  func.func @transform_0(%arg0: i32) -> (i32, i32) {
    %c0_i32 = arith.constant 0 : i32
    %c0_i32_0 = arith.constant 0 : i32
    return %c0_i32, %arg0 : i32, i32
  }
  func.func @transform_1(%arg0: i32) -> (i32, i32) {
    %c0_i32 = arith.constant 0 : i32
    %c0_i32_0 = arith.constant 0 : i32
    %c0_i32_1 = arith.constant 0 : i32
    return %c0_i32, %c0_i32_0 : i32, i32
  }
  func.func @transform_2(%arg0: i32) -> (i32, i32) {
    %c0_i32 = arith.constant 0 : i32
    %c0_i32_0 = arith.constant 0 : i32
    %c0_i32_1 = arith.constant 0 : i32
    return %c0_i32, %c0_i32_0 : i32, i32
  }
  func.func @transform_3(%arg0: i32) -> (i32, i32) {
    %c0_i32 = arith.constant 0 : i32
    %c0_i32_0 = arith.constant 0 : i32
    %c0_i32_1 = arith.constant 0 : i32
    return %c0_i32, %c0_i32_0 : i32, i32
  }
  func.func @transform_4(%arg0: i32) -> i32 {
    %c0_i32 = arith.constant 0 : i32
    %c0_i32_0 = arith.constant 0 : i32
    return %c0_i32 : i32
  }
  func.func @transform_5(%arg0: i32) -> (i32, i32) {
    %c0_i32 = arith.constant 0 : i32
    %c0_i32_0 = arith.constant 0 : i32
    return %c0_i32, %arg0 : i32, i32
  }
}

</mosaic_0001>

<llo_original>
// kernel: tpu_custom_call.1
$region0: #{tpu_custom_call.1}
  #allocation0 [shape = 'u32[]', space=smem, size = 0x4, offset = 0x4, fixed_abs, tag = 'smem constant byte address 0x4 - core index']
  #allocation1 [shape = 'u32[144,128]{1,0:T(1,128)}', space=vmem, size = 0x12000, scoped, tag = 'internal scratch']
  #allocation2 [shape = 'f32[1]{0:T(128)S(6)}', space=smem, size = 0x200, scoped, tag = 'scoped memory for tpu_custom_call.1']
  %s0 = inlined_call_operand.vmem [shape: f32[12,256], index: 0, kind: input, shape index: {}]
  %s1 = inlined_call_operand.vmem [shape: f32[64,12], index: 1, kind: input, shape index: {}]
  %s2 = inlined_call_operand.vmem [shape: f32[64,1], index: 2, kind: input, shape index: {}]
  %s3 = inlined_call_operand.vmem [shape: f32[64,1], index: 3, kind: input, shape index: {}]
  %s4 = inlined_call_operand.<no memory space> [shape: f32[1], index: 4, kind: input, shape index: {}]
  %s5 = inlined_call_operand.hbm [shape: f32[1,256], index: 5, kind: output, shape index: {}]
  %s6 = sld [smem:[#allocation0]]
  $region91: #{tpu_custom_call.1} parent=0
    _
  %s8 = ssub.s32 1, %s6
  %s9 = scalar_select 0, %s8, %s6
  %10 = sst [smem:[#allocation2]] %s4
  $region1: #{tpu_custom_call.1} parent=0
    #allocation3 [shape = 'u8[16384]{0}', space=vmem, size = 0x4000, scoped, tag = 'input window, operand 0']
    #allocation4 [shape = 'u8[1024]{0}', space=vmem, size = 0x400, scoped, tag = 'output window, operand 0']
    #allocation5 [shape = 's32[2]{0}', space=sflag, size = 0x8, scoped, tag = 'scoped memory for tpu_custom_call.1']
    %11 = vsyncpa [#allocation5], 0
    %s12 = scalar_lea.sflag [#allocation5], 1
    %13 = vsyncpa %s12, 0
    loop: start=0, step=1, limit=4
    $region2: #{tpu_custom_call.1} parent=1 // loop_pre_header
      _
    $region3: #{tpu_custom_call.1} parent=1 // loop_header
      %s15 = sphi 0, %s19
      %p16 = scmp.ge.s32.totalorder %s15, 4
      %s25 = sphi 0, %s27
      %s28 = sphi 0, %s25
      %s29 = sphi 0, %s28
      %s45 = sphi 0, %s29
      %s49 = sphi 0, %s49
      %s51 = sphi 0, %s49
      %s52 = sphi 0, %s51
      %s66 = sphi 0, %s52
      %s70 = sphi 0, %s70
      %s72 = sphi 0, %s70
      %s73 = sphi 0, %s72
      %s87 = sphi 0, %s73
      %s91 = sphi 0, %s91
      %s93 = sphi 0, %s91
      %s94 = sphi 0, %s93
      %s108 = sphi 0, %s94
      %s112 = sphi 0, %s112
      %s114 = sphi 0, %s112
      %s115 = sphi 0, %s114
      %s129 = sphi 0, %s115
      %s135 = sphi 0, %s137
      %s138 = sphi 0, %s135
      %s139 = sphi 0, %s138
      %s155 = sphi 0, %s139
    $region4: #{tpu_custom_call.1} parent=1 // loop_header_branch
      %18 = sbr.rel (%p16) target = $region8
    $region5: #{tpu_custom_call.1} parent=1 // loop_body
      %s20 = ssub.s32 %s15, 1
      %s21 = ssub.s32 %s15, 2
      %s22 = sadd.s32 %s15, 1
      %s23 = ssub.s32 %s15, %s22
      %p24 = scmp.eq.s32.totalorder %s23, 0
      %s26 = sadd.s32 %s25, 1
      %s27 = scalar_select %p24, %s25, %s26
      %p30 = pneg %p24
      %p31 = scmp.eq.s32.totalorder %s15, 1
      %p32 = por %p30, %p31
      %p33 = scmp.ne.s32.totalorder %s25, %s28
      %p34 = scmp.eq.s32.totalorder %s15, 0
      %p35 = por %p33, %p34
      %p36 = scmp.ne.s32.totalorder %s25, %s28
      %p37 = scmp.eq.s32.totalorder %s20, 1
      %p38 = por %p36, %p37
      %p39 = scmp.ne.s32.totalorder %s28, %s29
      %p40 = scmp.eq.s32.totalorder %s20, 0
      %p41 = por %p39, %p40
      %p42 = scmp.ne.s32.totalorder %s28, %s29
      %p43 = scmp.eq.s32.totalorder %s21, 1
      %p44 = por %p42, %p43
      %p46 = scmp.ne.s32.totalorder %s29, %s45
      %p47 = scmp.eq.s32.totalorder %s21, 0
      %p48 = por %p46, %p47
      %s50 = sadd.s32 %s49, 1
      %p53 = scmp.eq.s32.totalorder %s15, 1
      %p54 = scmp.ne.s32.totalorder %s49, %s51
      %p55 = scmp.eq.s32.totalorder %s15, 0
      %p56 = por %p54, %p55
      %p57 = scmp.ne.s32.totalorder %s49, %s51
      %p58 = scmp.eq.s32.totalorder %s20, 1
      %p59 = por %p57, %p58
      %p60 = scmp.ne.s32.totalorder %s51, %s52
      %p61 = scmp.eq.s32.totalorder %s20, 0
      %p62 = por %p60, %p61
      %p63 = scmp.ne.s32.totalorder %s51, %s52
      %p64 = scmp.eq.s32.totalorder %s21, 1
      %p65 = por %p63, %p64
      %p67 = scmp.ne.s32.totalorder %s52, %s66
      %p68 = scmp.eq.s32.totalorder %s21, 0
      %p69 = por %p67, %p68
      %s71 = sadd.s32 %s70, 1
      %p74 = scmp.eq.s32.totalorder %s15, 1
      %p75 = scmp.ne.s32.totalorder %s70, %s72
      %p76 = scmp.eq.s32.totalorder %s15, 0
      %p77 = por %p75, %p76
      %p78 = scmp.ne.s32.totalorder %s70, %s72
      %p79 = scmp.eq.s32.totalorder %s20, 1
      %p80 = por %p78, %p79
      %p81 = scmp.ne.s32.totalorder %s72, %s73
      %p82 = scmp.eq.s32.totalorder %s20, 0
      %p83 = por %p81, %p82
      %p84 = scmp.ne.s32.totalorder %s72, %s73
      %p85 = scmp.eq.s32.totalorder %s21, 1
      %p86 = por %p84, %p85
      %p88 = scmp.ne.s32.totalorder %s73, %s87
      %p89 = scmp.eq.s32.totalorder %s21, 0
      %p90 = por %p88, %p89
      %s92 = sadd.s32 %s91, 1
      %p95 = scmp.eq.s32.totalorder %s15, 1
      %p96 = scmp.ne.s32.totalorder %s91, %s93
      %p97 = scmp.eq.s32.totalorder %s15, 0
      %p98 = por %p96, %p97
      %p99 = scmp.ne.s32.totalorder %s91, %s93
      %p100 = scmp.eq.s32.totalorder %s20, 1
      %p101 = por %p99, %p100
      %p102 = scmp.ne.s32.totalorder %s93, %s94
      %p103 = scmp.eq.s32.totalorder %s20, 0
      %p104 = por %p102, %p103
      %p105 = scmp.ne.s32.totalorder %s93, %s94
      %p106 = scmp.eq.s32.totalorder %s21, 1
      %p107 = por %p105, %p106
      %p109 = scmp.ne.s32.totalorder %s94, %s108
      %p110 = scmp.eq.s32.totalorder %s21, 0
      %p111 = por %p109, %p110
      %s113 = sadd.s32 %s112, 1
      %p116 = scmp.eq.s32.totalorder %s15, 1
      %p117 = scmp.ne.s32.totalorder %s112, %s114
      %p118 = scmp.eq.s32.totalorder %s15, 0
      %p119 = por %p117, %p118
      %p120 = scmp.ne.s32.totalorder %s112, %s114
      %p121 = scmp.eq.s32.totalorder %s20, 1
      %p122 = por %p120, %p121
      %p123 = scmp.ne.s32.totalorder %s114, %s115
      %p124 = scmp.eq.s32.totalorder %s20, 0
      %p125 = por %p123, %p124
      %p126 = scmp.ne.s32.totalorder %s114, %s115
      %p127 = scmp.eq.s32.totalorder %s21, 1
      %p128 = por %p126, %p127
      %p130 = scmp.ne.s32.totalorder %s115, %s129
      %p131 = scmp.eq.s32.totalorder %s21, 0
      %p132 = por %p130, %p131
      %s133 = ssub.s32 %s15, %s22
      %p134 = scmp.eq.s32.totalorder %s133, 0
      %s136 = sadd.s32 %s135, 1
      %s137 = scalar_select %p134, %s135, %s136
      %p140 = pneg %p134
      %p141 = scmp.eq.s32.totalorder %s15, 1
      %p142 = por %p140, %p141
      %p143 = scmp.ne.s32.totalorder %s135, %s138
      %p144 = scmp.eq.s32.totalorder %s15, 0
      %p145 = por %p143, %p144
      %p146 = scmp.ne.s32.totalorder %s135, %s138
      %p147 = scmp.eq.s32.totalorder %s20, 1
      %p148 = por %p146, %p147
      %p149 = scmp.ne.s32.totalorder %s138, %s139
      %p150 = scmp.eq.s32.totalorder %s20, 0
      %p151 = por %p149, %p150
      %p152 = scmp.ne.s32.totalorder %s138, %s139
      %p153 = scmp.eq.s32.totalorder %s21, 1
      %p154 = por %p152, %p153
      %p156 = scmp.ne.s32.totalorder %s139, %s155
      %p157 = scmp.eq.s32.totalorder %s21, 0
      %p158 = por %p156, %p157
      %p159 = scmp.le.s32.totalorder 1, %s15
      %p160 = scmp.lt.s32.totalorder %s15, 3
      %p161 = pnand %p159, %p160
      %p162 = pneg %p161
      // Predicated region
      $region9: #{tpu_custom_call.1} parent=5 // pred_check
        _
      $region10: #{tpu_custom_call.1} parent=5 // pred_check_branch
        %164 = sbr.rel (%p161) target = $region12
      $region11: #{tpu_custom_call.1} parent=5 // pred_region
        %s165 = ssub.s32 %s15, 1
        // Predicated region
        $region13: #{tpu_custom_call.1} parent=11 // pred_check
          %p166 = pneg %p62
        $region14: #{tpu_custom_call.1} parent=11 // pred_check_branch
          %168 = sbr.rel (%p166) target = $region16
        $region15: #{tpu_custom_call.1} parent=11 // pred_region
          _
        $region16: #{tpu_custom_call.1} parent=11 // pred_fallthru
          _
        // Predicated region
        $region17: #{tpu_custom_call.1} parent=11 // pred_check
          %p169 = pneg %p83
        $region18: #{tpu_custom_call.1} parent=11 // pred_check_branch
          %171 = sbr.rel (%p169) target = $region20
        $region19: #{tpu_custom_call.1} parent=11 // pred_region
          _
        $region20: #{tpu_custom_call.1} parent=11 // pred_fallthru
          _
        // Predicated region
        $region21: #{tpu_custom_call.1} parent=11 // pred_check
          %p172 = pneg %p104
        $region22: #{tpu_custom_call.1} parent=11 // pred_check_branch
          %174 = sbr.rel (%p172) target = $region24
        $region23: #{tpu_custom_call.1} parent=11 // pred_region
          _
        $region24: #{tpu_custom_call.1} parent=11 // pred_fallthru
          _
        // Predicated region
        $region25: #{tpu_custom_call.1} parent=11 // pred_check
          %p175 = pneg %p125
        $region26: #{tpu_custom_call.1} parent=11 // pred_check_branch
          %177 = sbr.rel (%p175) target = $region28
        $region27: #{tpu_custom_call.1} parent=11 // pred_region
          _
        $region28: #{tpu_custom_call.1} parent=11 // pred_fallthru
          _
      $region12: #{tpu_custom_call.1} parent=5 // pred_fallthru
        _
      %p178 = scmp.lt.s32.totalorder %s15, 2
      // Predicated region
      $region29: #{tpu_custom_call.1} parent=5 // pred_check
        %p179 = pneg %p178
      $region30: #{tpu_custom_call.1} parent=5 // pred_check_branch
        %181 = sbr.rel (%p179) target = $region32
      $region31: #{tpu_custom_call.1} parent=5 // pred_region
        // Predicated region
        $region33: #{tpu_custom_call.1} parent=31 // pred_check
          %p182 = pneg %p35
        $region34: #{tpu_custom_call.1} parent=31 // pred_check_branch
          %184 = sbr.rel (%p182) target = $region36
        $region35: #{tpu_custom_call.1} parent=31 // pred_region
          %s185 = sand.u32 %s25, 1
          %s186 = sand.u32 %s25, 1
          %s187 = smul.addr %s186, 16
          %s188 = scalar_lea.vmem [#allocation3], %s187
          %s189 = smul.addr %s15, 8
          %s190 = scalar_lea.vmem %s0, %s189
          // Predicated region
          $region37: #{tpu_custom_call.1} parent=35 // pred_check
            _
          $region38: #{tpu_custom_call.1} parent=35 // pred_check_branch
            %192 = sbr.rel (0) target = $region40
          $region39: #{tpu_custom_call.1} parent=35 // pred_region
            // Predicated region
            $region41: #{tpu_custom_call.1} parent=39 // pred_check
              _
            $region42: #{tpu_custom_call.1} parent=39 // pred_check_branch
              %194 = sbr.rel (0) target = $region44
            $region43: #{tpu_custom_call.1} parent=39 // pred_region
              // Predicated region
              $region56: #{tpu_custom_call.1} parent=43 // pred_check
                _
              $region57: #{tpu_custom_call.1} parent=43 // pred_check_branch
                %211 = sbr.rel (0) target = $region59
              $region58: #{tpu_custom_call.1} parent=43 // pred_region
                loop: start=0, step=1, limit=1
                $region60: #{tpu_custom_call.1} parent=58 // loop_pre_header
                  _
                $region61: #{tpu_custom_call.1} parent=58 // loop_header
                  %s213 = sphi 0, %s217
                  %p214 = scmp.ge.s32.totalorder %s213, 1
                  %s218 = sphi %s190, %s190
                  %s219 = sphi %s188, %s188
                $region62: #{tpu_custom_call.1} parent=58 // loop_header_branch
                  %216 = sbr.rel (%p214) target = $region66
                $region63: #{tpu_custom_call.1} parent=58 // loop_body
                  %v220 = vld [vmem:[%s218] sm:$0xff]
                  %221 = vst [vmem:[%s219] sm:$0xff] %v220
                  %v222 = vld [vmem:[%s218 + $0x10] sm:$0xff]
                  %223 = vst [vmem:[%s219 + $0x8] sm:$0xff] %v222
                $region64: #{tpu_custom_call.1} parent=58 // loop_footer
                  %s217 = sadd.s32 1, %s213
                $region65: #{tpu_custom_call.1} parent=58 // loop_footer_branch
                  %212 = sbr.rel target = $region61
                $region66: #{tpu_custom_call.1} parent=58 // loop_exit
                  _
              $region59: #{tpu_custom_call.1} parent=43 // pred_fallthru
                _
              // Predicated region
              $region67: #{tpu_custom_call.1} parent=43 // pred_check
                _
              $region68: #{tpu_custom_call.1} parent=43 // pred_check_branch
                %225 = sbr.rel target = $region70
              $region69: #{tpu_custom_call.1} parent=43 // pred_region
                _
              $region70: #{tpu_custom_call.1} parent=43 // pred_fallthru
                _
            $region44: #{tpu_custom_call.1} parent=39 // pred_fallthru
              _
            // Predicated region
            $region45: #{tpu_custom_call.1} parent=39 // pred_check
              _
            $region46: #{tpu_custom_call.1} parent=39 // pred_check_branch
              %196 = sbr.rel target = $region48
            $region47: #{tpu_custom_call.1} parent=39 // pred_region
              loop: start=0, step=1, limit=1
              $region49: #{tpu_custom_call.1} parent=47 // loop_pre_header
                _
              $region50: #{tpu_custom_call.1} parent=47 // loop_header
                %s199 = sphi 0, %s203
                %p200 = scmp.ge.s32.totalorder %s199, 1
                %s204 = sphi %s190, %s190
                %s205 = sphi %s188, %s188
              $region51: #{tpu_custom_call.1} parent=47 // loop_header_branch
                %202 = sbr.rel (%p200) target = $region55
              $region52: #{tpu_custom_call.1} parent=47 // loop_body
                %v206 = vld [vmem:[%s204] sm:$0xff]
                %207 = vst [vmem:[%s205] sm:$0xff] %v206
                %v208 = vld [vmem:[%s204 + $0x10] sm:$0xff]
                %209 = vst [vmem:[%s205 + $0x8] sm:$0xff] %v208
              $region53: #{tpu_custom_call.1} parent=47 // loop_footer
                %s203 = sadd.s32 1, %s199
              $region54: #{tpu_custom_call.1} parent=47 // loop_footer_branch
                %198 = sbr.rel target = $region50
              $region55: #{tpu_custom_call.1} parent=47 // loop_exit
                _
            $region48: #{tpu_custom_call.1} parent=39 // pred_fallthru
              _
          $region40: #{tpu_custom_call.1} parent=35 // pred_fallthru
            _
          %226 = vnop
        $region36: #{tpu_custom_call.1} parent=31 // pred_fallthru
          _
      $region32: #{tpu_custom_call.1} parent=5 // pred_fallthru
        _
      %p227 = scmp.le.s32.totalorder 1, %s15
      %p228 = scmp.lt.s32.totalorder %s15, 3
      %p229 = pnand %p227, %p228
      %p230 = pneg %p229
      // Predicated region
      $region71: #{tpu_custom_call.1} parent=5 // pred_check
        _
      $region72: #{tpu_custom_call.1} parent=5 // pred_check_branch
        %232 = sbr.rel (%p229) target = $region74
      $region73: #{tpu_custom_call.1} parent=5 // pred_region
        %s233 = ssub.s32 %s15, 1
        %s234 = sand.u32 %s28, 1
        %s235 = sand.u32 %s28, 1
        %s236 = smul.addr %s235, 16
        %s237 = scalar_lea.vmem [#allocation3], %s236
        // Predicated region
        $region75: #{tpu_custom_call.1} parent=73 // pred_check
          %p238 = pneg %p41
        $region76: #{tpu_custom_call.1} parent=73 // pred_check_branch
          %240 = sbr.rel (%p238) target = $region78
        $region77: #{tpu_custom_call.1} parent=73 // pred_region
          _
        $region78: #{tpu_custom_call.1} parent=73 // pred_fallthru
          _
        %s241 = sand.u32 %s28, 1
        %s242 = sand.u32 %s28, 1
        %s243 = smul.addr %s242, 16
        %s244 = scalar_lea.vmem [#allocation3], %s243
        %p245 = pneg %p41
        %p246 = pneg %p38
        %p247 = pneg %p62
        %p248 = pneg %p59
        %p249 = pneg %p83
        %p250 = pneg %p80
        %p251 = pneg %p104
        %p252 = pneg %p101
        %p253 = pneg %p125
        %p254 = pneg %p122
        %p255 = pneg %p151
        %p256 = pneg %p148
        %s257 = sand.u32 %s138, 1
        %s258 = scalar_lea.sflag [#allocation5], %s257
        %s259 = sand.u32 %s138, 1
        %s260 = scalar_lea.vmem [#allocation4], %s259
        %v261 = vld [vmem:[%s1] sm:$0xff]
        %v262 = vld [vmem:[%s1 + $0x8] sm:$0xff]
        %v263 = vld [vmem:[%s1 + $0x10] sm:$0xff]
        %v264 = vld [vmem:[%s1 + $0x18] sm:$0xff]
        %v265 = vld [vmem:[%s1 + $0x20] sm:$0xff]
        %v266 = vld [vmem:[%s1 + $0x28] sm:$0xff]
        %v267 = vld [vmem:[%s1 + $0x30] sm:$0xff]
        %v268 = vld [vmem:[%s1 + $0x38] sm:$0xff]
        %v269 = vld [vmem:[%s237] sm:$0xff]
        %v270 = vld [vmem:[%s237 + $0x8] sm:$0xf]
        %v271 = vld [vmem:[%s2] sm:$0xff]
        %v272 = vld [vmem:[%s2 + $0x8] sm:$0xff]
        %v273 = vld [vmem:[%s2 + $0x10] sm:$0xff]
        %v274 = vld [vmem:[%s2 + $0x18] sm:$0xff]
        %v275 = vld [vmem:[%s2 + $0x20] sm:$0xff]
        %v276 = vld [vmem:[%s2 + $0x28] sm:$0xff]
        %v277 = vld [vmem:[%s2 + $0x30] sm:$0xff]
        %v278 = vld [vmem:[%s2 + $0x38] sm:$0xff]
        %280 = vset.pattern.permute.xlu0 0
        %281 = vperm.xlu0 %280, %v271
        %v282 = vpop.permute.xlu0 %281
        %285 = vset.pattern.permute.xlu0 0
        %286 = vperm.xlu0 %285, %v272
        %v287 = vpop.permute.xlu0 %286
        %290 = vset.pattern.permute.xlu0 0
        %291 = vperm.xlu0 %290, %v273
        %v292 = vpop.permute.xlu0 %291
        %295 = vset.pattern.permute.xlu0 0
        %296 = vperm.xlu0 %295, %v274
        %v297 = vpop.permute.xlu0 %296
        %300 = vset.pattern.permute.xlu0 0
        %301 = vperm.xlu0 %300, %v275
        %v302 = vpop.permute.xlu0 %301
        %305 = vset.pattern.permute.xlu0 0
        %306 = vperm.xlu0 %305, %v276
        %v307 = vpop.permute.xlu0 %306
        %310 = vset.pattern.permute.xlu0 0
        %311 = vperm.xlu0 %310, %v277
        %v312 = vpop.permute.xlu0 %311
        %315 = vset.pattern.permute.xlu0 0
        %316 = vperm.xlu0 %315, %v278
        %v317 = vpop.permute.xlu0 %316
        %vm319 = vcmask 97280
        %v321 = vsel %vm319, %v261, 0
        %v324 = vsel %vm319, %v262, 0
        %v327 = vsel %vm319, %v263, 0
        %v330 = vsel %vm319, %v264, 0
        %v333 = vsel %vm319, %v265, 0
        %v336 = vsel %vm319, %v266, 0
        %v339 = vsel %vm319, %v267, 0
        %v342 = vsel %vm319, %v268, 0
        %vm344 = vcmask 1043456
        %v346 = vsel %vm344, %v270, 0
        %348 = vmatprep.subr.mxu0 0.0
        %349 = vmatpush1.msra.mxu0 %v269
        %350 = vmatprep.subr.mxu0 0.0
        %351 = vmatpush1.msra.mxu0 %v346
        %352 = vmatprep.subr.mxu0 0.0
        %353 = vmatpush1.msra.mxu0 0.0
        %354 = vmatprep.subr.mxu0 0.0
        %355 = vmatpush1.msra.mxu0 0.0
        %356 = vmatprep.subr.mxu0 0.0
        %357 = vmatpush1.msra.mxu0 0.0
        %358 = vmatprep.subr.mxu0 0.0
        %359 = vmatpush1.msra.mxu0 0.0
        %360 = vmatprep.subr.mxu0 0.0
        %361 = vmatpush1.msra.mxu0 0.0
        %362 = vmatprep.subr.mxu0 0.0
        %363 = vmatpush1.msra.mxu0 0.0
        %364 = vmatprep.subr.mxu0 0.0
        %365 = vmatpush1.msra.mxu0 0.0
        %366 = vmatprep.subr.mxu0 0.0
        %367 = vmatpush1.msra.mxu0 0.0
        %368 = vmatprep.subr.mxu0 0.0
        %369 = vmatpush1.msra.mxu0 0.0
        %370 = vmatprep.subr.mxu0 0.0
        %371 = vmatpush1.msra.mxu0 0.0
        %372 = vmatprep.subr.mxu0 0.0
        %373 = vmatpush1.msra.mxu0 0.0
        %374 = vmatprep.subr.mxu0 0.0
        %375 = vmatpush1.msra.mxu0 0.0
        %376 = vmatprep.subr.mxu0 0.0
        %377 = vmatpush1.msra.mxu0 0.0
        %378 = vmatprep.subr.mxu0 0.0
        %379 = vmatpush1.msra.mxu0 0.0
        %380 = vmatprep.subr.mxu0 0.0
        %381 = vmatpush1.msra.mxu0 0.0
        %382 = vmatprep.subr.mxu0 0.0
        %383 = vmatpush1.msra.mxu0 0.0
        %384 = vmatprep.subr.mxu0 0.0
        %385 = vmatpush1.msra.mxu0 0.0
        %386 = vmatprep.subr.mxu0 0.0
        %387 = vmatpush1.msra.mxu0 0.0
        %388 = vmatprep.subr.mxu0 0.0
        %389 = vmatpush1.msra.mxu0 0.0
        %390 = vmatprep.subr.mxu0 0.0
        %391 = vmatpush1.msra.mxu0 0.0
        %392 = vmatprep.subr.mxu0 0.0
        %393 = vmatpush1.msra.mxu0 0.0
        %394 = vmatprep.subr.mxu0 0.0
        %395 = vmatpush1.msra.mxu0 0.0
        %396 = vmatprep.subr.mxu0 0.0
        %397 = vmatpush1.msra.mxu0 0.0
        %398 = vmatprep.subr.mxu0 0.0
        %399 = vmatpush1.msra.mxu0 0.0
        %400 = vmatprep.subr.mxu0 0.0
        %401 = vmatpush1.msra.mxu0 0.0
        %402 = vmatprep.subr.mxu0 0.0
        %403 = vmatpush1.msra.mxu0 0.0
        %404 = vmatprep.subr.mxu0 0.0
        %405 = vmatpush1.msra.mxu0 0.0
        %406 = vmatprep.subr.mxu0 0.0
        %407 = vmatpush1.msra.mxu0 0.0
        %408 = vmatprep.subr.mxu0 0.0
        %409 = vmatpush1.msra.mxu0 0.0
        %410 = vmatprep.subr.mxu0 0.0
        %411 = vmatpush1.msra.mxu0 0.0
        %412 = vmatprep.mubr.f32.mxu0 0.0
        %413 = vmatmul.mubr.f32.gmra.mrb[0].mxu0 %v321
        %v414 = vpop.f32.mrb[0].mxu0
        %v415 = vadd.f32 %v282, %v414
        %v416 = vpop.f32.mrb[0].mxu0
        %417 = vmatprep.mubr.f32.mxu0 0.0
        %418 = vmatmul.mubr.f32.gmra.mrb[0].mxu0 %v324
        %v419 = vpop.f32.mrb[0].mxu0
        %v420 = vadd.f32 %v287, %v419
        %v421 = vpop.f32.mrb[0].mxu0
        %422 = vmatprep.mubr.f32.mxu0 0.0
        %423 = vmatmul.mubr.f32.gmra.mrb[0].mxu0 %v327
        %v424 = vpop.f32.mrb[0].mxu0
        %v425 = vadd.f32 %v292, %v424
        %v426 = vpop.f32.mrb[0].mxu0
        %427 = vmatprep.mubr.f32.mxu0 0.0
        %428 = vmatmul.mubr.f32.gmra.mrb[0].mxu0 %v330
        %v429 = vpop.f32.mrb[0].mxu0
        %v430 = vadd.f32 %v297, %v429
        %v431 = vpop.f32.mrb[0].mxu0
        %432 = vmatprep.mubr.f32.mxu0 0.0
        %433 = vmatmul.mubr.f32.gmra.mrb[0].mxu0 %v333
        %v434 = vpop.f32.mrb[0].mxu0
        %v435 = vadd.f32 %v302, %v434
        %v436 = vpop.f32.mrb[0].mxu0
        %437 = vmatprep.mubr.f32.mxu0 0.0
        %438 = vmatmul.mubr.f32.gmra.mrb[0].mxu0 %v336
        %v439 = vpop.f32.mrb[0].mxu0
        %v440 = vadd.f32 %v307, %v439
        %v441 = vpop.f32.mrb[0].mxu0
        %442 = vmatprep.mubr.f32.mxu0 0.0
        %443 = vmatmul.mubr.f32.gmra.mrb[0].mxu0 %v339
        %v444 = vpop.f32.mrb[0].mxu0
        %v445 = vadd.f32 %v312, %v444
        %v446 = vpop.f32.mrb[0].mxu0
        %447 = vmatprep.mubr.f32.mxu0 0.0
        %448 = vmatmul.mubr.f32.gmra.mrb[0].mxu0 %v342
        %v449 = vpop.f32.mrb[0].mxu0
        %v450 = vadd.f32 %v317, %v449
        %v451 = vpop.f32.mrb[0].mxu0
        %452 = vdwg.mxu0
        %v453 = vmax.f32 %v415, 0.0
        %v454 = vmax.f32 %v420, 0.0
        %v455 = vmax.f32 %v425, 0.0
        %v456 = vmax.f32 %v430, 0.0
        %v457 = vmax.f32 %v435, 0.0
        %v458 = vmax.f32 %v440, 0.0
        %v459 = vmax.f32 %v445, 0.0
        %v460 = vmax.f32 %v450, 0.0
        %v461 = vld [vmem:[%s3] sm:$0xff]
        %v462 = vld [vmem:[%s3 + $0x8] sm:$0xff]
        %v463 = vld [vmem:[%s3 + $0x10] sm:$0xff]
        %v464 = vld [vmem:[%s3 + $0x18] sm:$0xff]
        %v465 = vld [vmem:[%s3 + $0x20] sm:$0xff]
        %v466 = vld [vmem:[%s3 + $0x28] sm:$0xff]
        %v467 = vld [vmem:[%s3 + $0x30] sm:$0xff]
        %v468 = vld [vmem:[%s3 + $0x38] sm:$0xff]
        %470 = vset.pattern.permute.xlu0 0
        %471 = vperm.xlu0 %470, %v461
        %v472 = vpop.permute.xlu0 %471
        %475 = vset.pattern.permute.xlu0 0
        %476 = vperm.xlu0 %475, %v462
        %v477 = vpop.permute.xlu0 %476
        %480 = vset.pattern.permute.xlu0 0
        %481 = vperm.xlu0 %480, %v463
        %v482 = vpop.permute.xlu0 %481
        %485 = vset.pattern.permute.xlu0 0
        %486 = vperm.xlu0 %485, %v464
        %v487 = vpop.permute.xlu0 %486
        %490 = vset.pattern.permute.xlu0 0
        %491 = vperm.xlu0 %490, %v465
        %v492 = vpop.permute.xlu0 %491
        %495 = vset.pattern.permute.xlu0 0
        %496 = vperm.xlu0 %495, %v466
        %v497 = vpop.permute.xlu0 %496
        %500 = vset.pattern.permute.xlu0 0
        %501 = vperm.xlu0 %500, %v467
        %v502 = vpop.permute.xlu0 %501
        %505 = vset.pattern.permute.xlu0 0
        %506 = vperm.xlu0 %505, %v468
        %v507 = vpop.permute.xlu0 %506
        %v509 = vmul.f32 %v453, %v472
        %v510 = vmul.f32 %v454, %v477
        %v511 = vmul.f32 %v455, %v482
        %v512 = vmul.f32 %v456, %v487
        %v513 = vmul.f32 %v457, %v492
        %v514 = vmul.f32 %v458, %v497
        %v515 = vmul.f32 %v459, %v502
        %v516 = vmul.f32 %v460, %v507
        %v517 = vadd.f32 %v509, %v510
        %v518 = vadd.f32 %v517, %v511
        %v519 = vadd.f32 %v518, %v512
        %v520 = vadd.f32 %v519, %v513
        %v521 = vadd.f32 %v520, %v514
        %v522 = vadd.f32 %v521, %v515
        %v523 = vadd.f32 %v522, %v516
        %v524 = vrot.slane %v523, 4
        %v525 = vadd.f32 %v523, %v524
        %v526 = vrot.slane %v525, 2
        %v527 = vadd.f32 %v525, %v526
        %v528 = vrot.slane %v527, 1
        %v529 = vadd.f32 %v527, %v528
        %s530 = sld [smem:[#allocation2]]
        %v531 = vstv %s530
        %v532 = vadd.f32 %v529, %v531
        %533 = vst [vmem:[%s260] sm:$0x1] %v532
        %s534 = sand.u32 %s138, 1
        %s535 = scalar_lea.sflag [#allocation5], %s534
        %s536 = sand.u32 %s138, 1
        %s537 = scalar_lea.vmem [#allocation4], %s536
        // Predicated region
        $region79: #{tpu_custom_call.1} parent=73 // pred_check
          %p538 = pneg %p148
        $region80: #{tpu_custom_call.1} parent=73 // pred_check_branch
          %540 = sbr.rel (%p538) target = $region82
        $region81: #{tpu_custom_call.1} parent=73 // pred_region
          %s542 = ssub.s32 16, 16
          %543 = vsyncadd %s535, %s542
          %s544 = smul.addr %s20, 16
          %s545 = scalar_lea.hbm %s5, %s544
          %s547 = sshll.u32 %s537, 4
          %s548 = int_to_ptr.vmem [resolvable:$true] %s547
          %550 = dma.vmem_to_hbm [thread:$0]  %s548, 16, %s545, %s535
        $region82: #{tpu_custom_call.1} parent=73 // pred_fallthru
          _
      $region74: #{tpu_custom_call.1} parent=5 // pred_fallthru
        _
      %p551 = scmp.le.s32.totalorder 2, %s15
      // Predicated region
      $region83: #{tpu_custom_call.1} parent=5 // pred_check
        %p552 = pneg %p551
      $region84: #{tpu_custom_call.1} parent=5 // pred_check_branch
        %554 = sbr.rel (%p552) target = $region86
      $region85: #{tpu_custom_call.1} parent=5 // pred_region
        %s555 = ssub.s32 %s15, 2
        // Predicated region
        $region87: #{tpu_custom_call.1} parent=85 // pred_check
          %p556 = pneg %p154
        $region88: #{tpu_custom_call.1} parent=85 // pred_check_branch
          %558 = sbr.rel (%p556) target = $region90
        $region89: #{tpu_custom_call.1} parent=85 // pred_region
          %s559 = sand.u32 %s139, 1
          %s560 = scalar_lea.sflag [#allocation5], %s559
          %s561 = sand.u32 %s139, 1
          %s562 = scalar_lea.vmem [#allocation4], %s561
          %563 = dma.done %s560, 16
        $region90: #{tpu_custom_call.1} parent=85 // pred_fallthru
          _
      $region86: #{tpu_custom_call.1} parent=5 // pred_fallthru
        _
    $region6: #{tpu_custom_call.1} parent=1 // loop_footer
      %s19 = sadd.s32 1, %s15
    $region7: #{tpu_custom_call.1} parent=1 // loop_footer_branch
      %14 = sbr.rel target = $region3
    $region8: #{tpu_custom_call.1} parent=1 // loop_exit
      _
    %564 = vsyncpa [#allocation5], 1
    %s565 = scalar_lea.sflag [#allocation5], 1
    %566 = vsyncpa %s565, 1

</llo_original>
